<compile_context>
chip_gen: v5e
topology: v5e:2x2
jax: 0.10.0
libtpu: 0.0.40
codegen_flags: <defaults>
</compile_context>

<pallas_src>
import functools

import jax
import jax.numpy as jnp
from jax import lax
from jax.experimental import pallas as pl
from jax.experimental.pallas import tpu as pltpu


def _round_up(x, m):
    return (x + m - 1) // m * m


_VMEM_LIMIT = 32 * 1024 * 1024  # above the v5e 16 MiB default, safe on v7x (64 MiB phys)


def _select_tiles(M, N, K):
    """Pick (TM, TN, TK). TN/TK always divide N/K exactly (or equal them)."""
    TN = 256 if N % 256 == 0 else (128 if N % 128 == 0 else N)
    TK = next((c for c in (512, 256, 128) if K % c == 0), K)
    TM = 512 if M >= 512 else _round_up(M, 8)
    # v7x has 2 TensorCores: keep the parallel (M,N) grid at >= 2 blocks when we can.
    if pl.cdiv(M, TM) * pl.cdiv(N, TN) == 1:
        if N >= 256 and N % 128 == 0:
            TN = 128
        elif M >= 16:
            TM = _round_up((M + 1) // 2, 8)
    return TM, TN, TK


# ---------------------------------------------------------------------------
# Kernel 1: tiled matmul + fused bias (+ residual) (+ ReLU)  -> bf16 out
# ---------------------------------------------------------------------------
def _mm_kernel(a_ref, w_ref, b_ref, *rest, relu, fuse_res):
    if fuse_res:
        r_ref, o_ref, acc_ref = rest
    else:
        o_ref, acc_ref = rest
    k = pl.program_id(2)

    @pl.when(k == 0)
    def _():
        # Folded-BN bias initialises the accumulator (one fewer epilogue add).
        acc_ref[...] = jnp.broadcast_to(b_ref[...], acc_ref.shape)

    acc_ref[...] += jnp.dot(a_ref[...], w_ref[...],
                            preferred_element_type=jnp.float32)

    @pl.when(k == pl.num_programs(2) - 1)
    def _():
        y = acc_ref[...]
        if fuse_res:
            y = y + r_ref[...].astype(jnp.float32)
        if relu:
            y = jnp.maximum(y, 0.0)
        o_ref[...] = y.astype(o_ref.dtype)


def matmul_bias_act(a, w, b, *, relu, residual=None):
    """act((a @ W) + bias [+ residual]); a/W/residual bf16, f32 accumulation."""
    M, K = a.shape
    N = w.shape[1]
    TM, TN, TK = _select_tiles(M, N, K)
    grid = (pl.cdiv(M, TM), pl.cdiv(N, TN), K // TK)

    in_specs = [
        pl.BlockSpec((TM, TK), lambda i, j, k: (i, k)),
        pl.BlockSpec((TK, TN), lambda i, j, k: (k, j)),
        pl.BlockSpec((1, TN), lambda i, j, k: (0, j)),
    ]
    args = [a, w, b]
    if residual is not None:
        in_specs.append(pl.BlockSpec((TM, TN), lambda i, j, k: (i, j)))
        args.append(residual)

    return pl.pallas_call(
        functools.partial(_mm_kernel, relu=relu, fuse_res=residual is not None),
        out_shape=jax.ShapeDtypeStruct((M, N), jnp.bfloat16),
        grid_spec=pltpu.PrefetchScalarGridSpec(
            num_scalar_prefetch=0,
            grid=grid,
            in_specs=in_specs,
            out_specs=pl.BlockSpec((TM, TN), lambda i, j, k: (i, j)),
            scratch_shapes=[pltpu.VMEM((TM, TN), jnp.float32)],
        ),
        compiler_params=pltpu.CompilerParams(
            dimension_semantics=("parallel", "parallel", "arbitrary"),
            vmem_limit_bytes=_VMEM_LIMIT),
    )(*args)


# ---------------------------------------------------------------------------
# Kernel 2: implicit-GEMM kxk stride-1 conv (tap axis in the reduction grid,
# activation tiles fetched from HBM with manual double-buffered DMA)
# ---------------------------------------------------------------------------
def _conv_tap_kernel(a_hbm, w_ref, b_ref, o_ref, abuf, sem, acc_ref, *,
                     tm, tk, nk, kw, off_h, off_w, relu):
    i = pl.program_id(0)
    r = pl.program_id(2)          # combined (tap, k-block) reduction index
    nr = pl.num_programs(2)
    slot = r % 2

    def start_fetch(rr, s):
        t = rr // nk              # tap index
        kb = rr % nk              # channel block within the tap
        off = (t // kw) * off_h + (t % kw) * off_w
        pltpu.make_async_copy(
            a_hbm.at[pl.ds(i * tm + off, tm), pl.ds(kb * tk, tk)],
            abuf.at[s], sem.at[s]).start()

    @pl.when(r == 0)
    def _():
        start_fetch(r, slot)      # prime the first tile of this (i, j) sequence
        acc_ref[...] = jnp.broadcast_to(b_ref[...], acc_ref.shape)

    # Wait for the current tile (primed above at r==0, else prefetched last step).
    pltpu.make_async_copy(a_hbm.at[pl.ds(0, tm), pl.ds(0, tk)],
                          abuf.at[slot], sem.at[slot]).wait()

    @pl.when(r + 1 < nr)
    def _():
        start_fetch(r + 1, 1 - slot)   # prefetch next tile into the other slot

    acc_ref[...] += jnp.dot(abuf[slot], w_ref[...],
                            preferred_element_type=jnp.float32)

    @pl.when(r == nr - 1)
    def _():
        y = acc_ref[...]
        if relu:
            y = jnp.maximum(y, 0.0)
        o_ref[...] = y.astype(o_ref.dtype)


def conv_kxk_implicit(x, p, *, padding, dilation, relu):
    """kxk stride-1 conv as implicit GEMM over the flat padded NHWC activation."""
    B, H, W, Cin = x.shape
    KH, KW, Cout = p["kh"], p["kw"], p["cout"]
    d = dilation
    Hp, Wp = H + 2 * padding, W + 2 * padding
    Hout = Hp - d * (KH - 1)
    Wout = Wp - d * (KW - 1)

    m_flat = B * Hp * Wp
    TM, TN, TK = _select_tiles(m_flat, Cout, Cin)
    nk = Cin // TK
    ntaps = KH * KW
    off_h, off_w = d * Wp, d
    max_off = (KH - 1) * off_h + (KW - 1) * off_w

    gm = pl.cdiv(m_flat, TM)
    gn = Cout // TN
    rows = gm * TM + max_off      # extra zero rows so every tap DMA is in-bounds

    xp = jnp.pad(x, ((0, 0), (padding, padding), (padding, padding), (0, 0)))
    a = xp.reshape(m_flat, Cin)
    a = jnp.pad(a, ((0, rows - m_flat), (0, 0)))

    out = pl.pallas_call(
        functools.partial(_conv_tap_kernel, tm=TM, tk=TK, nk=nk, kw=KW,
                          off_h=off_h, off_w=off_w, relu=relu),
        out_shape=jax.ShapeDtypeStruct((gm * TM, Cout), jnp.bfloat16),
        grid_spec=pltpu.PrefetchScalarGridSpec(
            num_scalar_prefetch=0,
            grid=(gm, gn, ntaps * nk),
            in_specs=[
                pl.BlockSpec(memory_space=pl.ANY),               # flat activation, HBM
                pl.BlockSpec((TK, TN), lambda i, j, r: (r, j)),  # im2col-layout weights
                pl.BlockSpec((1, TN), lambda i, j, r: (0, j)),   # folded BN bias
            ],
            out_specs=pl.BlockSpec((TM, TN), lambda i, j, r: (i, j)),
            scratch_shapes=[
                pltpu.VMEM((2, TM, TK), jnp.bfloat16),           # A double buffer
                pltpu.SemaphoreType.DMA((2,)),
                pltpu.VMEM((TM, TN), jnp.float32),               # f32 accumulator
            ],
        ),
        compiler_params=pltpu.CompilerParams(
            dimension_semantics=("parallel", "parallel", "arbitrary"),
            vmem_limit_bytes=_VMEM_LIMIT),
    )(a, p["w"], p["b"])

    # Drop the garbage rows (padding columns / tail rows), keep the valid window.
    return out[:m_flat].reshape(B, Hp, Wp, Cout)[:, :Hout, :Wout, :]


# ---------------------------------------------------------------------------
# Conv dispatch (1x1 reshape / implicit GEMM / im2col fallback), pooling
# ---------------------------------------------------------------------------
def conv_bn_act(x, p, *, stride=1, padding=0, dilation=1, relu=True,
                residual=None):
    """x: (B,H,W,Cin) NHWC bf16. Returns (B,Hout,Wout,Cout) bf16."""
    B, H, W, Cin = x.shape
    KH, KW, Cout = p["kh"], p["kw"], p["cout"]

    if KH == 1 and KW == 1:
        xs = x[:, ::stride, ::stride, :] if stride > 1 else x
        Hout, Wout = xs.shape[1], xs.shape[2]
        a = xs.reshape(B * Hout * Wout, Cin)
        res = None
        if residual is not None:
            res = residual.reshape(B * Hout * Wout, Cout)
        out = matmul_bias_act(a, p["w"], p["b"], relu=relu, residual=res)
        return out.reshape(B, Hout, Wout, Cout)

    if stride == 1:
        assert residual is None
        return conv_kxk_implicit(x, p, padding=padding, dilation=dilation,
                                 relu=relu)

    # TODO(synk): stride>1 spatial convs (7x7 stem, layer2's first 3x3) still use
    # im2col + the fused matmul; a strided-row implicit-GEMM variant would remove it.
    xp = jnp.pad(x, ((0, 0), (padding, padding), (padding, padding), (0, 0)))
    Hp, Wp = H + 2 * padding, W + 2 * padding
    Hout = (Hp - dilation * (KH - 1) - 1) // stride + 1
    Wout = (Wp - dilation * (KW - 1) - 1) // stride + 1
    cols = []
    for i in range(KH):
        for j in range(KW):
            hi, wj = i * dilation, j * dilation
            cols.append(xp[:, hi:hi + stride * (Hout - 1) + 1:stride,
                           wj:wj + stride * (Wout - 1) + 1:stride, :])
    patches = jnp.concatenate(cols, axis=-1)
    a = patches.reshape(B * Hout * Wout, KH * KW * Cin)
    out = matmul_bias_act(a, p["w"], p["b"], relu=relu, residual=None)
    return out.reshape(B, Hout, Wout, Cout)


def max_pool_3x3_s2(x):
    # Tiny fraction of total compute; kept in plain JAX glue.
    return lax.reduce_window(
        x, jnp.asarray(-jnp.inf, x.dtype), lax.max,
        window_dimensions=(1, 3, 3, 1),
        window_strides=(1, 2, 2, 1),
        padding=((0, 0), (1, 1), (1, 1), (0, 0)))


# ---------------------------------------------------------------------------
# Deterministic parameter construction (fcn_resnet50 architecture).
# All weight prep (BN-scale fold, (K,N) reshape, bf16 cast) happens once here.
# ---------------------------------------------------------------------------
class ParamGen:
    def __init__(self, seed=0):
        self.key = jax.random.PRNGKey(seed)

    def _next(self):
        self.key, sub = jax.random.split(self.key)
        return sub

    def conv(self, kh, kw, cin, cout):
        fan_in = kh * kw * cin
        w = jax.random.normal(self._next(), (kh, kw, cin, cout), jnp.float32)
        return w * jnp.sqrt(2.0 / fan_in)

    def bn(self, c, eps=1e-5):
        gamma = 1.0 + 0.1 * jax.random.normal(self._next(), (c,), jnp.float32)
        beta = 0.05 * jax.random.normal(self._next(), (c,), jnp.float32)
        mean = 0.05 * jax.random.normal(self._next(), (c,), jnp.float32)
        var = jax.random.uniform(self._next(), (c,), jnp.float32, 0.8, 1.2)
        scale = gamma / jnp.sqrt(var + eps)
        bias = beta - mean * scale
        return scale, bias


def prep_conv_bn(w, scale, bias):
    KH, KW, Cin, Cout = w.shape
    wmat = (w.reshape(KH * KW * Cin, Cout) * scale[None, :]).astype(jnp.bfloat16)
    return {"w": wmat, "b": bias.reshape(1, Cout).astype(jnp.float32),
            "kh": KH, "kw": KW, "cin": Cin, "cout": Cout}


def make_conv_bn(pg, kh, kw, cin, cout):
    w = pg.conv(kh, kw, cin, cout)
    scale, bias = pg.bn(cout)
    return prep_conv_bn(w, scale, bias)


def make_bottleneck(pg, inplanes, planes, stride, dilation, downsample):
    p = {
        "conv1": make_conv_bn(pg, 1, 1, inplanes, planes),
        "conv2": make_conv_bn(pg, 3, 3, planes, planes),
        "conv3": make_conv_bn(pg, 1, 1, planes, planes * 4),
        "stride": stride,
        "dilation": dilation,
    }
    if downsample:
        p["downsample"] = make_conv_bn(pg, 1, 1, inplanes, planes * 4)
    return p


def make_layer(pg, state, planes, blocks, stride=1, dilate=False):
    previous_dilation = state["dilation"]
    if dilate:
        state["dilation"] *= stride
        stride = 1
    need_ds = (stride != 1) or (state["inplanes"] != planes * 4)
    layer = [make_bottleneck(pg, state["inplanes"], planes, stride,
                             previous_dilation, need_ds)]
    state["inplanes"] = planes * 4
    for _ in range(1, blocks):
        layer.append(make_bottleneck(pg, state["inplanes"], planes, 1,
                                     state["dilation"], False))
    return layer


def init_fcn_resnet50(seed=0, n_classes=1):
    pg = ParamGen(seed)
    params = {"stem": make_conv_bn(pg, 7, 7, 3, 64)}
    state = {"inplanes": 64, "dilation": 1}
    params["layer1"] = make_layer(pg, state, 64, 3)
    params["layer2"] = make_layer(pg, state, 128, 4, stride=2)
    params["layer3"] = make_layer(pg, state, 256, 6, stride=2, dilate=True)
    params["layer4"] = make_layer(pg, state, 512, 3, stride=2, dilate=True)
    # FCNHead: Conv3x3(2048->512, no bias) + BN + ReLU + Dropout + Conv1x1(512->n_classes)
    params["head_conv"] = make_conv_bn(pg, 3, 3, 2048, 512)
    w_final = pg.conv(1, 1, 512, n_classes)
    b_final = 0.01 * jax.random.normal(pg._next(), (n_classes,), jnp.float32)
    params["final"] = prep_conv_bn(w_final, jnp.ones((n_classes,), jnp.float32),
                                   b_final)
    return params


# ---------------------------------------------------------------------------
# Forward pass (== FCN_res.forward, returning model(x)['out'])
# ---------------------------------------------------------------------------
def bottleneck_forward(x, p):
    out = conv_bn_act(x, p["conv1"], relu=True)
    out = conv_bn_act(out, p["conv2"], stride=p["stride"],
                      padding=p["dilation"], dilation=p["dilation"], relu=True)
    if "downsample" in p:
        identity = conv_bn_act(x, p["downsample"], stride=p["stride"], relu=False)
    else:
        identity = x
    # conv3 (1x1): folded-BN bias, residual add and ReLU fused into the matmul
    # epilogue -> no separate add_relu launch, no extra HBM round trip.
    return conv_bn_act(out, p["conv3"], relu=True, residual=identity)


def fcn_res_forward(params, x_nchw):
    x = jnp.transpose(x_nchw, (0, 2, 3, 1)).astype(jnp.bfloat16)  # NCHW -> NHWC bf16
    B, H_in, W_in = x.shape[0], x.shape[1], x.shape[2]

    x = conv_bn_act(x, params["stem"], stride=2, padding=3, relu=True)
    x = max_pool_3x3_s2(x)

    for layer_name in ("layer1", "layer2", "layer3", "layer4"):
        for blk in params[layer_name]:
            x = bottleneck_forward(x, blk)

    x = conv_bn_act(x, params["head_conv"], padding=1, relu=True)
    # Dropout(p=0.1): identity in eval mode.
    x = conv_bn_act(x, params["final"], relu=False)

    # F.interpolate(..., mode='bilinear', align_corners=False) equivalent.
    x = x.astype(jnp.float32)
    x = jax.image.resize(x, (B, H_in, W_in, x.shape[-1]), method="bilinear")
    return jnp.transpose(x, (0, 3, 1, 2))  # back to NCHW


if __name__ == "__main__":
    key = jax.random.PRNGKey(0)
    x = jax.random.normal(key, (2, 3, 32, 32), jnp.float32)  # NCHW like PyTorch
    params = init_fcn_resnet50(seed=0, n_classes=1)
    out = fcn_res_forward(params, x)
    out = jax.block_until_ready(out)
    assert out.shape == (2, 1, 32, 32), out.shape
    assert bool(jnp.all(jnp.isfinite(out)))
    print("KERNEL_OK")
</pallas_src>

<mosaic_0001>
module attributes {stable_mosaic.version = 11 : i64} {
  func.func @_mm_kernel(%arg0: i32, %arg1: i32, %arg2: i32, %arg3: memref<256x147xbf16, #tpu.memory_space<vmem>>, %arg4: memref<147x64xbf16, #tpu.memory_space<vmem>>, %arg5: memref<1x64xf32, #tpu.memory_space<vmem>>, %arg6: memref<256x64xbf16, #tpu.memory_space<vmem>>, %arg7: memref<256x64xf32, #tpu.memory_space<vmem>>) attributes {dimension_semantics = [#tpu.dimension_semantics<parallel>, #tpu.dimension_semantics<parallel>, #tpu.dimension_semantics<arbitrary>], iteration_bounds = array<i64: 2, 1, 1>, scalar_prefetch = 0 : i64, scratch_operands = 1 : i64, tpu.core_type = #tpu.core_type<tc>, window_params = [{transform_indices = @transform_0, window_bounds = array<i64: 256, 147>}, {transform_indices = @transform_1, window_bounds = array<i64: 147, 64>}, {transform_indices = @transform_2, window_bounds = array<i64: 1, 64>}, {transform_indices = @transform_3, window_bounds = array<i64: 256, 64>}]} {
    %c0_i32 = arith.constant 0 : i32
    %0 = arith.cmpi eq, %arg2, %c0_i32 : i32
    %1 = arith.extui %0 : i1 to i32
    %c0_i32_0 = arith.constant 0 : i32
    %2 = arith.cmpi ne, %1, %c0_i32_0 : i32
    scf.if %2 {
      %c0_10 = arith.constant 0 : index
      %c0_11 = arith.constant 0 : index
      %12 = vector.load %arg5[%c0_10, %c0_11] : memref<1x64xf32, #tpu.memory_space<vmem>>, vector<1x64xf32>
      %13 = vector.shape_cast %12 : vector<1x64xf32> to vector<1x64xf32>
      %14 = vector.broadcast %13 : vector<1x64xf32> to vector<256x64xf32>
      %c0_12 = arith.constant 0 : index
      %c0_13 = arith.constant 0 : index
      %15 = vector.load %arg7[%c0_12, %c0_13] : memref<256x64xf32, #tpu.memory_space<vmem>>, vector<256x64xf32>
      tpu.vector_store %arg7[%c0_12, %c0_13], %14 {strides = array<i32>} : memref<256x64xf32, #tpu.memory_space<vmem>>, vector<256x64xf32>,
    } else {
    }
    %c0 = arith.constant 0 : index
    %c0_1 = arith.constant 0 : index
    %3 = vector.load %arg7[%c0, %c0_1] : memref<256x64xf32, #tpu.memory_space<vmem>>, vector<256x64xf32>
    %c0_2 = arith.constant 0 : index
    %c0_3 = arith.constant 0 : index
    %4 = vector.load %arg3[%c0_2, %c0_3] : memref<256x147xbf16, #tpu.memory_space<vmem>>, vector<256x147xbf16>
    %c0_4 = arith.constant 0 : index
    %c0_5 = arith.constant 0 : index
    %5 = vector.load %arg4[%c0_4, %c0_5] : memref<147x64xbf16, #tpu.memory_space<vmem>>, vector<147x64xbf16>
    %cst = arith.constant dense<0.000000e+00> : vector<256x64xf32>
    %6 = tpu.matmul %4, %5, %cst {dimension_numbers = #tpu.dot_dimension_numbers<[1], [0], [0], [1], [0, 0, 1, 1], [], []>} : vector<256x147xbf16>, vector<147x64xbf16>, vector<256x64xf32> -> vector<256x64xf32>
    %7 = arith.addf %3, %6 : vector<256x64xf32>
    %c0_6 = arith.constant 0 : index
    %c0_7 = arith.constant 0 : index
    %8 = vector.load %arg7[%c0_6, %c0_7] : memref<256x64xf32, #tpu.memory_space<vmem>>, vector<256x64xf32>
    tpu.vector_store %arg7[%c0_6, %c0_7], %7 {strides = array<i32>} : memref<256x64xf32, #tpu.memory_space<vmem>>, vector<256x64xf32>,
    %c0_i32_8 = arith.constant 0 : i32
    %9 = arith.cmpi eq, %arg2, %c0_i32_8 : i32
    %10 = arith.extui %9 : i1 to i32
    %c0_i32_9 = arith.constant 0 : i32
    %11 = arith.cmpi ne, %10, %c0_i32_9 : i32
    scf.if %11 {
      %c0_10 = arith.constant 0 : index
      %c0_11 = arith.constant 0 : index
      %12 = vector.load %arg7[%c0_10, %c0_11] : memref<256x64xf32, #tpu.memory_space<vmem>>, vector<256x64xf32>
      %cst_12 = arith.constant 0.000000e+00 : f32
      %13 = vector.broadcast %cst_12 : f32 to vector<256x64xf32>
      %14 = arith.maximumf %12, %13 : vector<256x64xf32>
      %15 = arith.truncf %14 : vector<256x64xf32> to vector<256x64xbf16>
      %c0_13 = arith.constant 0 : index
      %c0_14 = arith.constant 0 : index
      %16 = vector.load %arg6[%c0_13, %c0_14] : memref<256x64xbf16, #tpu.memory_space<vmem>>, vector<256x64xbf16>
      tpu.vector_store %arg6[%c0_13, %c0_14], %15 {strides = array<i32>} : memref<256x64xbf16, #tpu.memory_space<vmem>>, vector<256x64xbf16>,
    } else {
    }
    return
  }
  func.func @transform_0(%arg0: i32, %arg1: i32, %arg2: i32) -> (i32, i32) {
    %c0_i32 = arith.constant 0 : i32
    return %arg0, %arg2 : i32, i32
  }
  func.func @transform_1(%arg0: i32, %arg1: i32, %arg2: i32) -> (i32, i32) {
    %c0_i32 = arith.constant 0 : i32
    return %arg2, %arg1 : i32, i32
  }
  func.func @transform_2(%arg0: i32, %arg1: i32, %arg2: i32) -> (i32, i32) {
    %c0_i32 = arith.constant 0 : i32
    %c0_i32_0 = arith.constant 0 : i32
    return %c0_i32, %arg1 : i32, i32
  }
  func.func @transform_3(%arg0: i32, %arg1: i32, %arg2: i32) -> (i32, i32) {
    %c0_i32 = arith.constant 0 : i32
    return %arg0, %arg1 : i32, i32
  }
}

</mosaic_0001>

<llo_original>
// kernel: tpu_custom_call.1
$region0: #{tpu_custom_call.1}
  #allocation0 [shape = 'u32[]', space=smem, size = 0x4, offset = 0x4, fixed_abs, tag = 'smem constant byte address 0x4 - core index']
  #allocation1 [shape = 'u32[72,128]{1,0:T(1,128)}', space=vmem, size = 0x9000, scoped, tag = 'internal scratch']
  #allocation2 [shape = 'f32[256,64]{1,0:T(8,128)}', space=vmem, size = 0x20000, scoped, tag = 'scratch operand']
  %s0 = inlined_call_operand.vmem [shape: bf16[512,147], index: 0, kind: input, shape index: {}]
  %s1 = inlined_call_operand.vmem [shape: bf16[147,64], index: 1, kind: input, shape index: {}]
  %s2 = inlined_call_operand.vmem [shape: f32[1,64], index: 2, kind: input, shape index: {}]
  %s3 = inlined_call_operand.vmem [shape: bf16[512,64], index: 3, kind: output, shape index: {}]
  %s4 = sld [smem:[#allocation0]]
  $region53: #{tpu_custom_call.1} parent=0
    _
  %s6 = ssub.s32 1, %s4
  %s7 = scalar_select 0, %s6, %s4
  loop: start=0, step=1, limit=4
  $region2: #{tpu_custom_call.1} parent=0 // loop_pre_header
    _
  $region3: #{tpu_custom_call.1} parent=0 // loop_header
    %s9 = sphi 0, %s13
    %p10 = scmp.ge.s32.totalorder %s9, 4
    %s16 = sphi 0, %s35
    %s17 = sphi 0, %s31
    %s18 = sphi 0, %s27
    %s19 = sphi 0, %s16
    %s20 = sphi 0, %s17
    %s21 = sphi 0, %s18
    %s22 = sphi 0, %s19
    %s23 = sphi 0, %s20
    %s24 = sphi 0, %s21
    %s40 = sphi 0, %s42
    %s43 = sphi 0, %s40
    %s44 = sphi 0, %s43
    %s60 = sphi 0, %s44
    %s68 = sphi 0, %s70
    %s71 = sphi 0, %s68
    %s72 = sphi 0, %s71
    %s88 = sphi 0, %s72
    %s94 = sphi 0, %s96
    %s97 = sphi 0, %s94
    %s98 = sphi 0, %s97
    %s114 = sphi 0, %s98
    %s122 = sphi 0, %s124
    %s125 = sphi 0, %s122
    %s126 = sphi 0, %s125
    %s142 = sphi 0, %s126
  $region4: #{tpu_custom_call.1} parent=0 // loop_header_branch
    %12 = sbr.rel (%p10) target = $region8
  $region5: #{tpu_custom_call.1} parent=0 // loop_body
    %s14 = ssub.s32 %s9, 1
    %s15 = ssub.s32 %s9, 2
    %s25 = sadd.s32 1, %s18
    %p26 = scmp.ge.s32.totalorder %s25, 1
    %s27 = scalar_select %p26, 0, %s25
    %s28 = sadd.s32 1, %s17
    %s29 = scalar_select %p26, %s28, %s17
    %p30 = scmp.ge.s32.totalorder %s29, 1
    %s31 = scalar_select %p30, 0, %s29
    %s32 = sadd.s32 1, %s16
    %s33 = scalar_select %p30, %s32, %s16
    %p34 = scmp.ge.s32.totalorder %s33, 2
    %s35 = scalar_select %p34, 0, %s33
    %s36 = ssub.s32 %s16, %s35
    %s37 = ssub.s32 %s18, %s27
    %s38 = sor.u32 %s36, %s37
    %p39 = scmp.eq.s32.totalorder %s38, 0
    %s41 = sadd.s32 %s40, 1
    %s42 = scalar_select %p39, %s40, %s41
    %p45 = pneg %p39
    %p46 = scmp.eq.s32.totalorder %s9, 1
    %p47 = por %p45, %p46
    %p48 = scmp.ne.s32.totalorder %s40, %s43
    %p49 = scmp.eq.s32.totalorder %s9, 0
    %p50 = por %p48, %p49
    %p51 = scmp.ne.s32.totalorder %s40, %s43
    %p52 = scmp.eq.s32.totalorder %s14, 1
    %p53 = por %p51, %p52
    %p54 = scmp.ne.s32.totalorder %s43, %s44
    %p55 = scmp.eq.s32.totalorder %s14, 0
    %p56 = por %p54, %p55
    %p57 = scmp.ne.s32.totalorder %s43, %s44
    %p58 = scmp.eq.s32.totalorder %s15, 1
    %p59 = por %p57, %p58
    %p61 = scmp.ne.s32.totalorder %s44, %s60
    %p62 = scmp.eq.s32.totalorder %s15, 0
    %p63 = por %p61, %p62
    %s64 = ssub.s32 %s18, %s27
    %s65 = ssub.s32 %s17, %s31
    %s66 = sor.u32 %s64, %s65
    %p67 = scmp.eq.s32.totalorder %s66, 0
    %s69 = sadd.s32 %s68, 1
    %s70 = scalar_select %p67, %s68, %s69
    %p73 = pneg %p67
    %p74 = scmp.eq.s32.totalorder %s9, 1
    %p75 = por %p73, %p74
    %p76 = scmp.ne.s32.totalorder %s68, %s71
    %p77 = scmp.eq.s32.totalorder %s9, 0
    %p78 = por %p76, %p77
    %p79 = scmp.ne.s32.totalorder %s68, %s71
    %p80 = scmp.eq.s32.totalorder %s14, 1
    %p81 = por %p79, %p80
    %p82 = scmp.ne.s32.totalorder %s71, %s72
    %p83 = scmp.eq.s32.totalorder %s14, 0
    %p84 = por %p82, %p83
    %p85 = scmp.ne.s32.totalorder %s71, %s72
    %p86 = scmp.eq.s32.totalorder %s15, 1
    %p87 = por %p85, %p86
    %p89 = scmp.ne.s32.totalorder %s72, %s88
    %p90 = scmp.eq.s32.totalorder %s15, 0
    %p91 = por %p89, %p90
    %s92 = ssub.s32 %s17, %s31
    %p93 = scmp.eq.s32.totalorder %s92, 0
    %s95 = sadd.s32 %s94, 1
    %s96 = scalar_select %p93, %s94, %s95
    %p99 = pneg %p93
    %p100 = scmp.eq.s32.totalorder %s9, 1
    %p101 = por %p99, %p100
    %p102 = scmp.ne.s32.totalorder %s94, %s97
    %p103 = scmp.eq.s32.totalorder %s9, 0
    %p104 = por %p102, %p103
    %p105 = scmp.ne.s32.totalorder %s94, %s97
    %p106 = scmp.eq.s32.totalorder %s14, 1
    %p107 = por %p105, %p106
    %p108 = scmp.ne.s32.totalorder %s97, %s98
    %p109 = scmp.eq.s32.totalorder %s14, 0
    %p110 = por %p108, %p109
    %p111 = scmp.ne.s32.totalorder %s97, %s98
    %p112 = scmp.eq.s32.totalorder %s15, 1
    %p113 = por %p111, %p112
    %p115 = scmp.ne.s32.totalorder %s98, %s114
    %p116 = scmp.eq.s32.totalorder %s15, 0
    %p117 = por %p115, %p116
    %s118 = ssub.s32 %s16, %s35
    %s119 = ssub.s32 %s17, %s31
    %s120 = sor.u32 %s118, %s119
    %p121 = scmp.eq.s32.totalorder %s120, 0
    %s123 = sadd.s32 %s122, 1
    %s124 = scalar_select %p121, %s122, %s123
    %p127 = pneg %p121
    %p128 = scmp.eq.s32.totalorder %s9, 1
    %p129 = por %p127, %p128
    %p130 = scmp.ne.s32.totalorder %s122, %s125
    %p131 = scmp.eq.s32.totalorder %s9, 0
    %p132 = por %p130, %p131
    %p133 = scmp.ne.s32.totalorder %s122, %s125
    %p134 = scmp.eq.s32.totalorder %s14, 1
    %p135 = por %p133, %p134
    %p136 = scmp.ne.s32.totalorder %s125, %s126
    %p137 = scmp.eq.s32.totalorder %s14, 0
    %p138 = por %p136, %p137
    %p139 = scmp.ne.s32.totalorder %s125, %s126
    %p140 = scmp.eq.s32.totalorder %s15, 1
    %p141 = por %p139, %p140
    %p143 = scmp.ne.s32.totalorder %s126, %s142
    %p144 = scmp.eq.s32.totalorder %s15, 0
    %p145 = por %p143, %p144
    %p146 = scmp.le.s32.totalorder 1, %s9
    %p147 = scmp.lt.s32.totalorder %s9, 3
    %p148 = pnand %p146, %p147
    %p149 = pneg %p148
    // Predicated region
    $region9: #{tpu_custom_call.1} parent=5 // pred_check
      _
    $region10: #{tpu_custom_call.1} parent=5 // pred_check_branch
      %151 = sbr.rel (%p148) target = $region12
    $region11: #{tpu_custom_call.1} parent=5 // pred_region
      %s152 = ssub.s32 %s9, 1
      // Predicated region
      $region13: #{tpu_custom_call.1} parent=11 // pred_check
        %p153 = pneg %p84
      $region14: #{tpu_custom_call.1} parent=11 // pred_check_branch
        %155 = sbr.rel (%p153) target = $region16
      $region15: #{tpu_custom_call.1} parent=11 // pred_region
        %s156 = smul.u32 19, %s21
        %p157 = scmp.lt.s32.totalorder %s156, 18
        %s158 = scalar_select %p157, %s156, 18
        %p159 = scmp.lt.s32.totalorder %s20, 0
        %s160 = scalar_select %p159, %s20, 0
        %s161 = sadd.s32 %s160, %s158
        %s162 = smul.addr %s161, 4
        %s163 = scalar_lea.vmem %s1, %s162
        %s164 = smul.u32 19, %s21
      $region16: #{tpu_custom_call.1} parent=11 // pred_fallthru
        _
      // Predicated region
      $region17: #{tpu_custom_call.1} parent=11 // pred_check
        %p165 = pneg %p110
      $region18: #{tpu_custom_call.1} parent=11 // pred_check_branch
        %167 = sbr.rel (%p165) target = $region20
      $region19: #{tpu_custom_call.1} parent=11 // pred_region
        %p168 = scmp.lt.s32.totalorder %s20, 0
        %s169 = scalar_select %p168, %s20, 0
        %s170 = scalar_lea.vmem %s2, %s169
      $region20: #{tpu_custom_call.1} parent=11 // pred_fallthru
        _
    $region12: #{tpu_custom_call.1} parent=5 // pred_fallthru
      _
    %p171 = scmp.lt.s32.totalorder %s9, 2
    // Predicated region
    $region21: #{tpu_custom_call.1} parent=5 // pred_check
      %p172 = pneg %p171
    $region22: #{tpu_custom_call.1} parent=5 // pred_check_branch
      %174 = sbr.rel (%p172) target = $region24
    $region23: #{tpu_custom_call.1} parent=5 // pred_region
      // Predicated region
      $region25: #{tpu_custom_call.1} parent=23 // pred_check
        %p175 = pneg %p50
      $region26: #{tpu_custom_call.1} parent=23 // pred_check_branch
        %177 = sbr.rel (%p175) target = $region28
      $region27: #{tpu_custom_call.1} parent=23 // pred_region
        %s178 = smul.u32 32, %s16
        %s179 = smul.u32 2, %s18
        %p180 = scmp.lt.s32.totalorder %s178, 63
        %s181 = scalar_select %p180, %s178, 63
        %p182 = scmp.lt.s32.totalorder %s179, 1
        %s183 = scalar_select %p182, %s179, 1
        %s184 = smul.addr %s181, 2
        %s185 = sadd.s32 %s183, %s184
        %s186 = smul.addr %s185, 4
        %s187 = scalar_lea.vmem %s0, %s186
        %s188 = smul.u32 32, %s16
        %s189 = smul.u32 2, %s18
      $region28: #{tpu_custom_call.1} parent=23 // pred_fallthru
        _
    $region24: #{tpu_custom_call.1} parent=5 // pred_fallthru
      _
    %p190 = scmp.le.s32.totalorder 1, %s9
    %p191 = scmp.lt.s32.totalorder %s9, 3
    %p192 = pnand %p190, %p191
    %p193 = pneg %p192
    // Predicated region
    $region29: #{tpu_custom_call.1} parent=5 // pred_check
      _
    $region30: #{tpu_custom_call.1} parent=5 // pred_check_branch
      %195 = sbr.rel (%p192) target = $region32
    $region31: #{tpu_custom_call.1} parent=5 // pred_region
      %s196 = ssub.s32 %s9, 1
      %s197 = smul.u32 32, %s19
      %s198 = smul.u32 2, %s21
      %p199 = scmp.lt.s32.totalorder %s197, 63
      %s200 = scalar_select %p199, %s197, 63
      %p201 = scmp.lt.s32.totalorder %s198, 1
      %s202 = scalar_select %p201, %s198, 1
      %s203 = smul.addr %s200, 2
      %s204 = sadd.s32 %s202, %s203
      %s205 = smul.addr %s204, 4
      %s206 = scalar_lea.vmem %s0, %s205
      %p207 = pneg %p56
      %p208 = pneg %p53
      %s209 = smul.u32 19, %s21
      %p210 = scmp.lt.s32.totalorder %s209, 18
      %s211 = scalar_select %p210, %s209, 18
      %p212 = scmp.lt.s32.totalorder %s20, 0
      %s213 = scalar_select %p212, %s20, 0
      %s214 = sadd.s32 %s213, %s211
      %s215 = smul.addr %s214, 4
      %s216 = scalar_lea.vmem %s1, %s215
      %p217 = pneg %p84
      %p218 = pneg %p81
      %p219 = scmp.lt.s32.totalorder %s20, 0
      %s220 = scalar_select %p219, %s20, 0
      %s221 = scalar_lea.vmem %s2, %s220
      %p222 = pneg %p110
      %p223 = pneg %p107
      %p224 = pneg %p138
      %p225 = pneg %p135
      %s226 = smul.u32 32, %s19
      %p227 = scmp.lt.s32.totalorder %s226, 63
      %s228 = scalar_select %p227, %s226, 63
      %p229 = scmp.lt.s32.totalorder %s20, 0
      %s230 = scalar_select %p229, %s20, 0
      %s231 = sadd.s32 %s230, %s228
      %s232 = smul.addr %s231, 4
      %s233 = scalar_lea.vmem %s3, %s232
      %s234 = smul.u32 32, %s19
      %s235 = smul.u32 2, %s21
      %p236 = scmp.lt.s32.totalorder %s234, 63
      %s237 = scalar_select %p236, %s234, 63
      %p238 = scmp.lt.s32.totalorder %s235, 1
      %s239 = scalar_select %p238, %s235, 1
      %s240 = smul.addr %s237, 2
      %s241 = sadd.s32 %s239, %s240
      %s242 = smul.addr %s241, 4
      %s243 = scalar_lea.vmem %s0, %s242
      %s244 = smul.u32 32, %s19
      %s245 = smul.u32 2, %s21
      %s246 = smul.u32 19, %s21
      %p247 = scmp.lt.s32.totalorder %s246, 18
      %s248 = scalar_select %p247, %s246, 18
      %p249 = scmp.lt.s32.totalorder %s20, 0
      %s250 = scalar_select %p249, %s20, 0
      %s251 = sadd.s32 %s250, %s248
      %s252 = smul.addr %s251, 4
      %s253 = scalar_lea.vmem %s1, %s252
      %s254 = smul.u32 19, %s21
      %p255 = scmp.lt.s32.totalorder %s20, 0
      %s256 = scalar_select %p255, %s20, 0
      %s257 = scalar_lea.vmem %s2, %s256
      %s258 = smul.u32 32, %s19
      %p259 = scmp.lt.s32.totalorder %s258, 63
      %s260 = scalar_select %p259, %s258, 63
      %p261 = scmp.lt.s32.totalorder %s20, 0
      %s262 = scalar_select %p261, %s20, 0
      %s263 = sadd.s32 %s262, %s260
      %s264 = smul.addr %s263, 4
      %s265 = scalar_lea.vmem %s3, %s264
      %s266 = smul.u32 32, %s19
      %p268 = scmp.eq.s32.totalorder %s21, 0
      // Predicated region
      $region33: #{tpu_custom_call.1} parent=31 // pred_check
        %p269 = pneg %p268
      $region34: #{tpu_custom_call.1} parent=31 // pred_check_branch
        %271 = sbr.rel (%p269) target = $region36
      $region35: #{tpu_custom_call.1} parent=31 // pred_region
        %v272 = vld [vmem:[%s257] sm:$0x1]
        %v274 = vperm.slane %v272, 0
        %vm276 = vcmask 523264
        %277 = vst.msk [vmem:[#allocation2] sm:$0xff] %vm276, %v274
        %278 = vst.msk [vmem:[#allocation2 + $0x8] sm:$0xff] %vm276, %v274
        %279 = vst.msk [vmem:[#allocation2 + $0x10] sm:$0xff] %vm276, %v274
        %280 = vst.msk [vmem:[#allocation2 + $0x18] sm:$0xff] %vm276, %v274
        %281 = vst.msk [vmem:[#allocation2 + $0x20] sm:$0xff] %vm276, %v274
        %282 = vst.msk [vmem:[#allocation2 + $0x28] sm:$0xff] %vm276, %v274
        %283 = vst.msk [vmem:[#allocation2 + $0x30] sm:$0xff] %vm276, %v274
        %284 = vst.msk [vmem:[#allocation2 + $0x38] sm:$0xff] %vm276, %v274
        %285 = vst.msk [vmem:[#allocation2 + $0x40] sm:$0xff] %vm276, %v274
        %286 = vst.msk [vmem:[#allocation2 + $0x48] sm:$0xff] %vm276, %v274
        %287 = vst.msk [vmem:[#allocation2 + $0x50] sm:$0xff] %vm276, %v274
        %288 = vst.msk [vmem:[#allocation2 + $0x58] sm:$0xff] %vm276, %v274
        %289 = vst.msk [vmem:[#allocation2 + $0x60] sm:$0xff] %vm276, %v274
        %290 = vst.msk [vmem:[#allocation2 + $0x68] sm:$0xff] %vm276, %v274
        %291 = vst.msk [vmem:[#allocation2 + $0x70] sm:$0xff] %vm276, %v274
        %292 = vst.msk [vmem:[#allocation2 + $0x78] sm:$0xff] %vm276, %v274
        %293 = vst.msk [vmem:[#allocation2 + $0x80] sm:$0xff] %vm276, %v274
        %294 = vst.msk [vmem:[#allocation2 + $0x88] sm:$0xff] %vm276, %v274
        %295 = vst.msk [vmem:[#allocation2 + $0x90] sm:$0xff] %vm276, %v274
        %296 = vst.msk [vmem:[#allocation2 + $0x98] sm:$0xff] %vm276, %v274
        %297 = vst.msk [vmem:[#allocation2 + $0xa0] sm:$0xff] %vm276, %v274
        %298 = vst.msk [vmem:[#allocation2 + $0xa8] sm:$0xff] %vm276, %v274
        %299 = vst.msk [vmem:[#allocation2 + $0xb0] sm:$0xff] %vm276, %v274
        %300 = vst.msk [vmem:[#allocation2 + $0xb8] sm:$0xff] %vm276, %v274
        %301 = vst.msk [vmem:[#allocation2 + $0xc0] sm:$0xff] %vm276, %v274
        %302 = vst.msk [vmem:[#allocation2 + $0xc8] sm:$0xff] %vm276, %v274
        %303 = vst.msk [vmem:[#allocation2 + $0xd0] sm:$0xff] %vm276, %v274
        %304 = vst.msk [vmem:[#allocation2 + $0xd8] sm:$0xff] %vm276, %v274
        %305 = vst.msk [vmem:[#allocation2 + $0xe0] sm:$0xff] %vm276, %v274
        %306 = vst.msk [vmem:[#allocation2 + $0xe8] sm:$0xff] %vm276, %v274
        %307 = vst.msk [vmem:[#allocation2 + $0xf0] sm:$0xff] %vm276, %v274
        %308 = vst.msk [vmem:[#allocation2 + $0xf8] sm:$0xff] %vm276, %v274
      $region36: #{tpu_custom_call.1} parent=31 // pred_fallthru
        _
      %v309 = vld [vmem:[#allocation2] sm:$0xff]
      %v310 = vld [vmem:[#allocation2 + $0x8] sm:$0xff]
      %v311 = vld [vmem:[#allocation2 + $0x10] sm:$0xff]
      %v312 = vld [vmem:[#allocation2 + $0x18] sm:$0xff]
      %v313 = vld [vmem:[#allocation2 + $0x20] sm:$0xff]
      %v314 = vld [vmem:[#allocation2 + $0x28] sm:$0xff]
      %v315 = vld [vmem:[#allocation2 + $0x30] sm:$0xff]
      %v316 = vld [vmem:[#allocation2 + $0x38] sm:$0xff]
      %v317 = vld [vmem:[#allocation2 + $0x40] sm:$0xff]
      %v318 = vld [vmem:[#allocation2 + $0x48] sm:$0xff]
      %v319 = vld [vmem:[#allocation2 + $0x50] sm:$0xff]
      %v320 = vld [vmem:[#allocation2 + $0x58] sm:$0xff]
      %v321 = vld [vmem:[#allocation2 + $0x60] sm:$0xff]
      %v322 = vld [vmem:[#allocation2 + $0x68] sm:$0xff]
      %v323 = vld [vmem:[#allocation2 + $0x70] sm:$0xff]
      %v324 = vld [vmem:[#allocation2 + $0x78] sm:$0xff]
      %v325 = vld [vmem:[#allocation2 + $0x80] sm:$0xff]
      %v326 = vld [vmem:[#allocation2 + $0x88] sm:$0xff]
      %v327 = vld [vmem:[#allocation2 + $0x90] sm:$0xff]
      %v328 = vld [vmem:[#allocation2 + $0x98] sm:$0xff]
      %v329 = vld [vmem:[#allocation2 + $0xa0] sm:$0xff]
      %v330 = vld [vmem:[#allocation2 + $0xa8] sm:$0xff]
      %v331 = vld [vmem:[#allocation2 + $0xb0] sm:$0xff]
      %v332 = vld [vmem:[#allocation2 + $0xb8] sm:$0xff]
      %v333 = vld [vmem:[#allocation2 + $0xc0] sm:$0xff]
      %v334 = vld [vmem:[#allocation2 + $0xc8] sm:$0xff]
      %v335 = vld [vmem:[#allocation2 + $0xd0] sm:$0xff]
      %v336 = vld [vmem:[#allocation2 + $0xd8] sm:$0xff]
      %v337 = vld [vmem:[#allocation2 + $0xe0] sm:$0xff]
      %v338 = vld [vmem:[#allocation2 + $0xe8] sm:$0xff]
      %v339 = vld [vmem:[#allocation2 + $0xf0] sm:$0xff]
      %v340 = vld [vmem:[#allocation2 + $0xf8] sm:$0xff]
      %v341 = vld [vmem:[%s243] sm:$0xff]
      %v342 = vld [vmem:[%s243 + $0x8] sm:$0xff]
      %v343 = vld [vmem:[%s243 + $0x10] sm:$0xff]
      %v344 = vld [vmem:[%s243 + $0x18] sm:$0xff]
      %v345 = vld [vmem:[%s243 + $0x20] sm:$0xff]
      %v346 = vld [vmem:[%s243 + $0x28] sm:$0xff]
      %v347 = vld [vmem:[%s243 + $0x30] sm:$0xff]
      %v348 = vld [vmem:[%s243 + $0x38] sm:$0xff]
      %v349 = vld [vmem:[%s243 + $0x40] sm:$0xff]
      %v350 = vld [vmem:[%s243 + $0x48] sm:$0xff]
      %v351 = vld [vmem:[%s243 + $0x50] sm:$0xff]
      %v352 = vld [vmem:[%s243 + $0x58] sm:$0xff]
      %v353 = vld [vmem:[%s243 + $0x60] sm:$0xff]
      %v354 = vld [vmem:[%s243 + $0x68] sm:$0xff]
      %v355 = vld [vmem:[%s243 + $0x70] sm:$0xff]
      %v356 = vld [vmem:[%s243 + $0x78] sm:$0xff]
      %v357 = vld [vmem:[%s243 + $0x80] sm:$0xff]
      %v358 = vld [vmem:[%s243 + $0x88] sm:$0xff]
      %v359 = vld [vmem:[%s243 + $0x90] sm:$0xff]
      %v360 = vld [vmem:[%s243 + $0x98] sm:$0xff]
      %v361 = vld [vmem:[%s243 + $0xa0] sm:$0xff]
      %v362 = vld [vmem:[%s243 + $0xa8] sm:$0xff]
      %v363 = vld [vmem:[%s243 + $0xb0] sm:$0xff]
      %v364 = vld [vmem:[%s243 + $0xb8] sm:$0xff]
      %v365 = vld [vmem:[%s243 + $0xc0] sm:$0xff]
      %v366 = vld [vmem:[%s243 + $0xc8] sm:$0xff]
      %v367 = vld [vmem:[%s243 + $0xd0] sm:$0xff]
      %v368 = vld [vmem:[%s243 + $0xd8] sm:$0xff]
      %v369 = vld [vmem:[%s243 + $0xe0] sm:$0xff]
      %v370 = vld [vmem:[%s243 + $0xe8] sm:$0xff]
      %v371 = vld [vmem:[%s243 + $0xf0] sm:$0xff]
      %v372 = vld [vmem:[%s243 + $0xf8] sm:$0xff]
      %v373 = vld [vmem:[%s253] sm:$0xf]
      %v374 = vld [vmem:[%s253 + $0x4] sm:$0xf]
      %v375 = vld [vmem:[%s253 + $0x8] sm:$0xf]
      %v376 = vld [vmem:[%s253 + $0xc] sm:$0xf]
      %v377 = vld [vmem:[%s253 + $0x10] sm:$0xf]
      %v378 = vld [vmem:[%s253 + $0x14] sm:$0xf]
      %v379 = vld [vmem:[%s253 + $0x18] sm:$0xf]
      %v380 = vld [vmem:[%s253 + $0x1c] sm:$0xf]
      %v381 = vld [vmem:[%s253 + $0x20] sm:$0xf]
      %v382 = vld [vmem:[%s253 + $0x24] sm:$0xf]
      %v383 = vld [vmem:[%s253 + $0x28] sm:$0xf]
      %v384 = vld [vmem:[%s253 + $0x2c] sm:$0xf]
      %v385 = vld [vmem:[%s253 + $0x30] sm:$0xf]
      %v386 = vld [vmem:[%s253 + $0x34] sm:$0xf]
      %v387 = vld [vmem:[%s253 + $0x38] sm:$0xf]
      %v388 = vld [vmem:[%s253 + $0x3c] sm:$0xf]
      %v389 = vld [vmem:[%s253 + $0x40] sm:$0xf]
      %v390 = vld [vmem:[%s253 + $0x44] sm:$0xf]
      %v391 = vld [vmem:[%s253 + $0x48] sm:$0x3]
      %v424 = vunpack.c.l.b16 %v341
      %v425 = vunpack.c.h.b16 %v341
      %v426 = vunpack.c.l.b16 %v342
      %v427 = vunpack.c.h.b16 %v342
      %v428 = vunpack.c.l.b16 %v343
      %v429 = vunpack.c.h.b16 %v343
      %v430 = vunpack.c.l.b16 %v344
      %v431 = vunpack.c.h.b16 %v344
      %v432 = vunpack.c.l.b16 %v345
      %v433 = vunpack.c.h.b16 %v345
      %v434 = vunpack.c.l.b16 %v346
      %v435 = vunpack.c.h.b16 %v346
      %v436 = vunpack.c.l.b16 %v347
      %v437 = vunpack.c.h.b16 %v347
      %v438 = vunpack.c.l.b16 %v348
      %v439 = vunpack.c.h.b16 %v348
      %v440 = vunpack.c.l.b16 %v349
      %v441 = vunpack.c.h.b16 %v349
      %v442 = vunpack.c.l.b16 %v350
      %v443 = vunpack.c.h.b16 %v350
      %v444 = vunpack.c.l.b16 %v351
      %v445 = vunpack.c.h.b16 %v351
      %v446 = vunpack.c.l.b16 %v352
      %v447 = vunpack.c.h.b16 %v352
      %v448 = vunpack.c.l.b16 %v353
      %v449 = vunpack.c.h.b16 %v353
      %v450 = vunpack.c.l.b16 %v354
      %v451 = vunpack.c.h.b16 %v354
      %v452 = vunpack.c.l.b16 %v355
      %v453 = vunpack.c.h.b16 %v355
      %v454 = vunpack.c.l.b16 %v356
      %v455 = vunpack.c.h.b16 %v356
      %v456 = vunpack.c.l.b16 %v357
      %v457 = vunpack.c.h.b16 %v357
      %v458 = vunpack.c.l.b16 %v358
      %v459 = vunpack.c.h.b16 %v358
      %v460 = vunpack.c.l.b16 %v359
      %v461 = vunpack.c.h.b16 %v359
      %v462 = vunpack.c.l.b16 %v360
      %v463 = vunpack.c.h.b16 %v360
      %v464 = vunpack.c.l.b16 %v361
      %v465 = vunpack.c.h.b16 %v361
      %v466 = vunpack.c.l.b16 %v362
      %v467 = vunpack.c.h.b16 %v362
      %v468 = vunpack.c.l.b16 %v363
      %v469 = vunpack.c.h.b16 %v363
      %v470 = vunpack.c.l.b16 %v364
      %v471 = vunpack.c.h.b16 %v364
      %v472 = vunpack.c.l.b16 %v365
      %v473 = vunpack.c.h.b16 %v365
      %v474 = vunpack.c.l.b16 %v366
      %v475 = vunpack.c.h.b16 %v366
      %v476 = vunpack.c.l.b16 %v367
      %v477 = vunpack.c.h.b16 %v367
      %v478 = vunpack.c.l.b16 %v368
      %v479 = vunpack.c.h.b16 %v368
      %v480 = vunpack.c.l.b16 %v369
      %v481 = vunpack.c.h.b16 %v369
      %v482 = vunpack.c.l.b16 %v370
      %v483 = vunpack.c.h.b16 %v370
      %v484 = vunpack.c.l.b16 %v371
      %v485 = vunpack.c.h.b16 %v371
      %v486 = vunpack.c.l.b16 %v372
      %v487 = vunpack.c.h.b16 %v372
      %v488 = vpack.c.b16 %v426, %v424
      %v489 = vpack.c.b16 %v427, %v425
      %v490 = vpack.c.b16 %v430, %v428
      %v491 = vpack.c.b16 %v431, %v429
      %v492 = vpack.c.b16 %v434, %v432
      %v493 = vpack.c.b16 %v435, %v433
      %v494 = vpack.c.b16 %v438, %v436
      %v495 = vpack.c.b16 %v439, %v437
      %v496 = vpack.c.b16 %v442, %v440
      %v497 = vpack.c.b16 %v443, %v441
      %v498 = vpack.c.b16 %v446, %v444
      %v499 = vpack.c.b16 %v447, %v445
      %v500 = vpack.c.b16 %v450, %v448
      %v501 = vpack.c.b16 %v451, %v449
      %v502 = vpack.c.b16 %v454, %v452
      %v503 = vpack.c.b16 %v455, %v453
      %v504 = vpack.c.b16 %v458, %v456
      %v505 = vpack.c.b16 %v459, %v457
      %v506 = vpack.c.b16 %v462, %v460
      %v507 = vpack.c.b16 %v463, %v461
      %v508 = vpack.c.b16 %v466, %v464
      %v509 = vpack.c.b16 %v467, %v465
      %v510 = vpack.c.b16 %v470, %v468
      %v511 = vpack.c.b16 %v471, %v469
      %v512 = vpack.c.b16 %v474, %v472
      %v513 = vpack.c.b16 %v475, %v473
      %v514 = vpack.c.b16 %v478, %v476
      %v515 = vpack.c.b16 %v479, %v477
      %v516 = vpack.c.b16 %v482, %v480
      %v517 = vpack.c.b16 %v483, %v481
      %v518 = vpack.c.b16 %v486, %v484
      %v519 = vpack.c.b16 %v487, %v485
      %v555 = vunpack.c.l.b16 %v373
      %v556 = vunpack.c.l.b16 %v374
      %v557 = vunpack.c.l.b16 %v375
      %v558 = vunpack.c.l.b16 %v376
      %v559 = vunpack.c.l.b16 %v377
      %v560 = vunpack.c.l.b16 %v378
      %v561 = vunpack.c.l.b16 %v379
      %v562 = vunpack.c.l.b16 %v380
      %v563 = vunpack.c.l.b16 %v381
      %v564 = vunpack.c.l.b16 %v382
      %v565 = vunpack.c.l.b16 %v383
      %v566 = vunpack.c.l.b16 %v384
      %v567 = vunpack.c.l.b16 %v385
      %v568 = vunpack.c.l.b16 %v386
      %v569 = vunpack.c.l.b16 %v387
      %v570 = vunpack.c.l.b16 %v388
      %v571 = vunpack.c.l.b16 %v389
      %v572 = vunpack.c.l.b16 %v390
      %v573 = vunpack.c.l.b16 %v391
      %v574 = vpack.c.b16 %v556, %v555
      %v575 = vpack.c.b16 %v558, %v557
      %v576 = vpack.c.b16 %v560, %v559
      %v577 = vpack.c.b16 %v562, %v561
      %v578 = vpack.c.b16 %v564, %v563
      %v579 = vpack.c.b16 %v566, %v565
      %v580 = vpack.c.b16 %v568, %v567
      %v581 = vpack.c.b16 %v570, %v569
      %v582 = vpack.c.b16 %v572, %v571
      %v583 = vpack.c.b16 %v573, %v573
      %vm593 = vcmask 154624
      %v595 = vsel %vm593, %v489, 0
      %v598 = vsel %vm593, %v491, 0
      %v601 = vsel %vm593, %v493, 0
      %v604 = vsel %vm593, %v495, 0
      %v607 = vsel %vm593, %v497, 0
      %v610 = vsel %vm593, %v499, 0
      %v613 = vsel %vm593, %v501, 0
      %v616 = vsel %vm593, %v503, 0
      %v619 = vsel %vm593, %v505, 0
      %v622 = vsel %vm593, %v507, 0
      %v625 = vsel %vm593, %v509, 0
      %v628 = vsel %vm593, %v511, 0
      %v631 = vsel %vm593, %v513, 0
      %v634 = vsel %vm593, %v515, 0
      %v637 = vsel %vm593, %v517, 0
      %v640 = vsel %vm593, %v519, 0
      %vm642 = vcmask 1040384
      %vm643 = vcmask 1041408
      %v644 = vsel %vm642, 4294967295, 65535
      %v645 = vsel %vm643, %v644, 0
      %v647 = vand.u32 %v583, %v645
      %649 = vmatpush.bf16.msra.mxu0 %v581
      %650 = vmatpush.bf16.msra.mxu0 %v580
      %651 = vmatpush.bf16.msra.mxu0 %v579
      %652 = vmatpush.bf16.msra.mxu0 %v578
      %653 = vmatpush.bf16.msra.mxu0 %v577
      %654 = vmatpush.bf16.msra.mxu0 %v576
      %655 = vmatpush.bf16.msra.mxu0 %v575
      %656 = vmatpush.bf16.msra.mxu0 %v574
      %657 = vmatmul.bf16.gmra.mxu0 %v488
      %v658 = vpop.f32.mrf.mxu0
      %v659 = vadd.f32 0.0, %v658
      %v660 = vpop.f32.mrf.mxu0
      %v661 = vadd.f32 0.0, %v660
      %662 = vmatmul.bf16.gmra.mxu0 %v490
      %v663 = vpop.f32.mrf.mxu0
      %v664 = vadd.f32 0.0, %v663
      %v665 = vpop.f32.mrf.mxu0
      %v666 = vadd.f32 0.0, %v665
      %667 = vmatmul.bf16.gmra.mxu0 %v492
      %v668 = vpop.f32.mrf.mxu0
      %v669 = vadd.f32 0.0, %v668
      %v670 = vpop.f32.mrf.mxu0
      %v671 = vadd.f32 0.0, %v670
      %672 = vmatmul.bf16.gmra.mxu0 %v494
      %v673 = vpop.f32.mrf.mxu0
      %v674 = vadd.f32 0.0, %v673
      %v675 = vpop.f32.mrf.mxu0
      %v676 = vadd.f32 0.0, %v675
      %677 = vmatmul.bf16.gmra.mxu0 %v496
      %v678 = vpop.f32.mrf.mxu0
      %v679 = vadd.f32 0.0, %v678
      %v680 = vpop.f32.mrf.mxu0
      %v681 = vadd.f32 0.0, %v680
      %682 = vmatmul.bf16.gmra.mxu0 %v498
      %v683 = vpop.f32.mrf.mxu0
      %v684 = vadd.f32 0.0, %v683
      %v685 = vpop.f32.mrf.mxu0
      %v686 = vadd.f32 0.0, %v685
      %687 = vmatmul.bf16.gmra.mxu0 %v500
      %v688 = vpop.f32.mrf.mxu0
      %v689 = vadd.f32 0.0, %v688
      %v690 = vpop.f32.mrf.mxu0
      %v691 = vadd.f32 0.0, %v690
      %692 = vmatmul.bf16.gmra.mxu0 %v502
      %v693 = vpop.f32.mrf.mxu0
      %v694 = vadd.f32 0.0, %v693
      %v695 = vpop.f32.mrf.mxu0
      %v696 = vadd.f32 0.0, %v695
      %697 = vmatmul.bf16.gmra.mxu0 %v504
      %v698 = vpop.f32.mrf.mxu0
      %v699 = vadd.f32 0.0, %v698
      %v700 = vpop.f32.mrf.mxu0
      %v701 = vadd.f32 0.0, %v700
      %702 = vmatmul.bf16.gmra.mxu0 %v506
      %v703 = vpop.f32.mrf.mxu0
      %v704 = vadd.f32 0.0, %v703
      %v705 = vpop.f32.mrf.mxu0
      %v706 = vadd.f32 0.0, %v705
      %707 = vmatmul.bf16.gmra.mxu0 %v508
      %v708 = vpop.f32.mrf.mxu0
      %v709 = vadd.f32 0.0, %v708
      %v710 = vpop.f32.mrf.mxu0
      %v711 = vadd.f32 0.0, %v710
      %712 = vmatmul.bf16.gmra.mxu0 %v510
      %v713 = vpop.f32.mrf.mxu0
      %v714 = vadd.f32 0.0, %v713
      %v715 = vpop.f32.mrf.mxu0
      %v716 = vadd.f32 0.0, %v715
      %717 = vmatmul.bf16.gmra.mxu0 %v512
      %v718 = vpop.f32.mrf.mxu0
      %v719 = vadd.f32 0.0, %v718
      %v720 = vpop.f32.mrf.mxu0
      %v721 = vadd.f32 0.0, %v720
      %722 = vmatmul.bf16.gmra.mxu0 %v514
      %v723 = vpop.f32.mrf.mxu0
      %v724 = vadd.f32 0.0, %v723
      %v725 = vpop.f32.mrf.mxu0
      %v726 = vadd.f32 0.0, %v725
      %727 = vmatmul.bf16.gmra.mxu0 %v516
      %v728 = vpop.f32.mrf.mxu0
      %v729 = vadd.f32 0.0, %v728
      %v730 = vpop.f32.mrf.mxu0
      %v731 = vadd.f32 0.0, %v730
      %732 = vmatmul.bf16.gmra.mxu0 %v518
      %v733 = vpop.f32.mrf.mxu0
      %v734 = vadd.f32 0.0, %v733
      %v735 = vpop.f32.mrf.mxu0
      %v736 = vadd.f32 0.0, %v735
      %737 = vdwg.mxu0
      %738 = vmatpush.bf16.msra.mxu0 0
      %739 = vmatpush.bf16.msra.mxu0 0
      %740 = vmatpush.bf16.msra.mxu0 0
      %741 = vmatpush.bf16.msra.mxu0 0
      %742 = vmatpush.bf16.msra.mxu0 0
      %743 = vmatpush.bf16.msra.mxu0 0
      %744 = vmatpush.bf16.msra.mxu0 %v647
      %745 = vmatpush.bf16.msra.mxu0 %v582
      %746 = vmatmul.bf16.gmra.mxu0 %v595
      %v747 = vpop.f32.mrf.mxu0
      %v748 = vadd.f32 %v659, %v747
      %v749 = vpop.f32.mrf.mxu0
      %v750 = vadd.f32 %v661, %v749
      %751 = vmatmul.bf16.gmra.mxu0 %v598
      %v752 = vpop.f32.mrf.mxu0
      %v753 = vadd.f32 %v664, %v752
      %v754 = vpop.f32.mrf.mxu0
      %v755 = vadd.f32 %v666, %v754
      %756 = vmatmul.bf16.gmra.mxu0 %v601
      %v757 = vpop.f32.mrf.mxu0
      %v758 = vadd.f32 %v669, %v757
      %v759 = vpop.f32.mrf.mxu0
      %v760 = vadd.f32 %v671, %v759
      %761 = vmatmul.bf16.gmra.mxu0 %v604
      %v762 = vpop.f32.mrf.mxu0
      %v763 = vadd.f32 %v674, %v762
      %v764 = vpop.f32.mrf.mxu0
      %v765 = vadd.f32 %v676, %v764
      %766 = vmatmul.bf16.gmra.mxu0 %v607
      %v767 = vpop.f32.mrf.mxu0
      %v768 = vadd.f32 %v679, %v767
      %v769 = vpop.f32.mrf.mxu0
      %v770 = vadd.f32 %v681, %v769
      %771 = vmatmul.bf16.gmra.mxu0 %v610
      %v772 = vpop.f32.mrf.mxu0
      %v773 = vadd.f32 %v684, %v772
      %v774 = vpop.f32.mrf.mxu0
      %v775 = vadd.f32 %v686, %v774
      %776 = vmatmul.bf16.gmra.mxu0 %v613
      %v777 = vpop.f32.mrf.mxu0
      %v778 = vadd.f32 %v689, %v777
      %v779 = vpop.f32.mrf.mxu0
      %v780 = vadd.f32 %v691, %v779
      %781 = vmatmul.bf16.gmra.mxu0 %v616
      %v782 = vpop.f32.mrf.mxu0
      %v783 = vadd.f32 %v694, %v782
      %v784 = vpop.f32.mrf.mxu0
      %v785 = vadd.f32 %v696, %v784
      %786 = vmatmul.bf16.gmra.mxu0 %v619
      %v787 = vpop.f32.mrf.mxu0
      %v788 = vadd.f32 %v699, %v787
      %v789 = vpop.f32.mrf.mxu0
      %v790 = vadd.f32 %v701, %v789
      %791 = vmatmul.bf16.gmra.mxu0 %v622
      %v792 = vpop.f32.mrf.mxu0
      %v793 = vadd.f32 %v704, %v792
      %v794 = vpop.f32.mrf.mxu0
      %v795 = vadd.f32 %v706, %v794
      %796 = vmatmul.bf16.gmra.mxu0 %v625
      %v797 = vpop.f32.mrf.mxu0
      %v798 = vadd.f32 %v709, %v797
      %v799 = vpop.f32.mrf.mxu0
      %v800 = vadd.f32 %v711, %v799
      %801 = vmatmul.bf16.gmra.mxu0 %v628
      %v802 = vpop.f32.mrf.mxu0
      %v803 = vadd.f32 %v714, %v802
      %v804 = vpop.f32.mrf.mxu0
      %v805 = vadd.f32 %v716, %v804
      %806 = vmatmul.bf16.gmra.mxu0 %v631
      %v807 = vpop.f32.mrf.mxu0
      %v808 = vadd.f32 %v719, %v807
      %v809 = vpop.f32.mrf.mxu0
      %v810 = vadd.f32 %v721, %v809
      %811 = vmatmul.bf16.gmra.mxu0 %v634
      %v812 = vpop.f32.mrf.mxu0
      %v813 = vadd.f32 %v724, %v812
      %v814 = vpop.f32.mrf.mxu0
      %v815 = vadd.f32 %v726, %v814
      %816 = vmatmul.bf16.gmra.mxu0 %v637
      %v817 = vpop.f32.mrf.mxu0
      %v818 = vadd.f32 %v729, %v817
      %v819 = vpop.f32.mrf.mxu0
      %v820 = vadd.f32 %v731, %v819
      %821 = vmatmul.bf16.gmra.mxu0 %v640
      %v822 = vpop.f32.mrf.mxu0
      %v823 = vadd.f32 %v734, %v822
      %v824 = vpop.f32.mrf.mxu0
      %v825 = vadd.f32 %v736, %v824
      %826 = vdwg.mxu0
      %v827 = vadd.f32 %v309, %v748
      %v828 = vadd.f32 %v310, %v750
      %v829 = vadd.f32 %v311, %v753
      %v830 = vadd.f32 %v312, %v755
      %v831 = vadd.f32 %v313, %v758
      %v832 = vadd.f32 %v314, %v760
      %v833 = vadd.f32 %v315, %v763
      %v834 = vadd.f32 %v316, %v765
      %v835 = vadd.f32 %v317, %v768
      %v836 = vadd.f32 %v318, %v770
      %v837 = vadd.f32 %v319, %v773
      %v838 = vadd.f32 %v320, %v775
      %v839 = vadd.f32 %v321, %v778
      %v840 = vadd.f32 %v322, %v780
      %v841 = vadd.f32 %v323, %v783
      %v842 = vadd.f32 %v324, %v785
      %v843 = vadd.f32 %v325, %v788
      %v844 = vadd.f32 %v326, %v790
      %v845 = vadd.f32 %v327, %v793
      %v846 = vadd.f32 %v328, %v795
      %v847 = vadd.f32 %v329, %v798
      %v848 = vadd.f32 %v330, %v800
      %v849 = vadd.f32 %v331, %v803
      %v850 = vadd.f32 %v332, %v805
      %v851 = vadd.f32 %v333, %v808
      %v852 = vadd.f32 %v334, %v810
      %v853 = vadd.f32 %v335, %v813
      %v854 = vadd.f32 %v336, %v815
      %v855 = vadd.f32 %v337, %v818
      %v856 = vadd.f32 %v338, %v820
      %v857 = vadd.f32 %v339, %v823
      %v858 = vadd.f32 %v340, %v825
      %vm859 = vcmask 523264
      %860 = vst.msk [vmem:[#allocation2] sm:$0xff] %vm859, %v827
      %861 = vst.msk [vmem:[#allocation2 + $0x8] sm:$0xff] %vm859, %v828
      %862 = vst.msk [vmem:[#allocation2 + $0x10] sm:$0xff] %vm859, %v829
      %863 = vst.msk [vmem:[#allocation2 + $0x18] sm:$0xff] %vm859, %v830
      %864 = vst.msk [vmem:[#allocation2 + $0x20] sm:$0xff] %vm859, %v831
      %865 = vst.msk [vmem:[#allocation2 + $0x28] sm:$0xff] %vm859, %v832
      %866 = vst.msk [vmem:[#allocation2 + $0x30] sm:$0xff] %vm859, %v833
      %867 = vst.msk [vmem:[#allocation2 + $0x38] sm:$0xff] %vm859, %v834
      %868 = vst.msk [vmem:[#allocation2 + $0x40] sm:$0xff] %vm859, %v835
      %869 = vst.msk [vmem:[#allocation2 + $0x48] sm:$0xff] %vm859, %v836
      %870 = vst.msk [vmem:[#allocation2 + $0x50] sm:$0xff] %vm859, %v837
      %871 = vst.msk [vmem:[#allocation2 + $0x58] sm:$0xff] %vm859, %v838
      %872 = vst.msk [vmem:[#allocation2 + $0x60] sm:$0xff] %vm859, %v839
      %873 = vst.msk [vmem:[#allocation2 + $0x68] sm:$0xff] %vm859, %v840
      %874 = vst.msk [vmem:[#allocation2 + $0x70] sm:$0xff] %vm859, %v841
      %875 = vst.msk [vmem:[#allocation2 + $0x78] sm:$0xff] %vm859, %v842
      %876 = vst.msk [vmem:[#allocation2 + $0x80] sm:$0xff] %vm859, %v843
      %877 = vst.msk [vmem:[#allocation2 + $0x88] sm:$0xff] %vm859, %v844
      %878 = vst.msk [vmem:[#allocation2 + $0x90] sm:$0xff] %vm859, %v845
      %879 = vst.msk [vmem:[#allocation2 + $0x98] sm:$0xff] %vm859, %v846
      %880 = vst.msk [vmem:[#allocation2 + $0xa0] sm:$0xff] %vm859, %v847
      %881 = vst.msk [vmem:[#allocation2 + $0xa8] sm:$0xff] %vm859, %v848
      %882 = vst.msk [vmem:[#allocation2 + $0xb0] sm:$0xff] %vm859, %v849
      %883 = vst.msk [vmem:[#allocation2 + $0xb8] sm:$0xff] %vm859, %v850
      %884 = vst.msk [vmem:[#allocation2 + $0xc0] sm:$0xff] %vm859, %v851
      %885 = vst.msk [vmem:[#allocation2 + $0xc8] sm:$0xff] %vm859, %v852
      %886 = vst.msk [vmem:[#allocation2 + $0xd0] sm:$0xff] %vm859, %v853
      %887 = vst.msk [vmem:[#allocation2 + $0xd8] sm:$0xff] %vm859, %v854
      %888 = vst.msk [vmem:[#allocation2 + $0xe0] sm:$0xff] %vm859, %v855
      %889 = vst.msk [vmem:[#allocation2 + $0xe8] sm:$0xff] %vm859, %v856
      %890 = vst.msk [vmem:[#allocation2 + $0xf0] sm:$0xff] %vm859, %v857
      %891 = vst.msk [vmem:[#allocation2 + $0xf8] sm:$0xff] %vm859, %v858
      // Predicated region
      $region37: #{tpu_custom_call.1} parent=31 // pred_check
        %p892 = pneg %p268
      $region38: #{tpu_custom_call.1} parent=31 // pred_check_branch
        %894 = sbr.rel (%p892) target = $region40
      $region39: #{tpu_custom_call.1} parent=31 // pred_region
        %v895 = vld [vmem:[#allocation2] sm:$0xff]
        %v896 = vld [vmem:[#allocation2 + $0x8] sm:$0xff]
        %v897 = vld [vmem:[#allocation2 + $0x10] sm:$0xff]
        %v898 = vld [vmem:[#allocation2 + $0x18] sm:$0xff]
        %v899 = vld [vmem:[#allocation2 + $0x20] sm:$0xff]
        %v900 = vld [vmem:[#allocation2 + $0x28] sm:$0xff]
        %v901 = vld [vmem:[#allocation2 + $0x30] sm:$0xff]
        %v902 = vld [vmem:[#allocation2 + $0x38] sm:$0xff]
        %v903 = vld [vmem:[#allocation2 + $0x40] sm:$0xff]
        %v904 = vld [vmem:[#allocation2 + $0x48] sm:$0xff]
        %v905 = vld [vmem:[#allocation2 + $0x50] sm:$0xff]
        %v906 = vld [vmem:[#allocation2 + $0x58] sm:$0xff]
        %v907 = vld [vmem:[#allocation2 + $0x60] sm:$0xff]
        %v908 = vld [vmem:[#allocation2 + $0x68] sm:$0xff]
        %v909 = vld [vmem:[#allocation2 + $0x70] sm:$0xff]
        %v910 = vld [vmem:[#allocation2 + $0x78] sm:$0xff]
        %v911 = vld [vmem:[#allocation2 + $0x80] sm:$0xff]
        %v912 = vld [vmem:[#allocation2 + $0x88] sm:$0xff]
        %v913 = vld [vmem:[#allocation2 + $0x90] sm:$0xff]
        %v914 = vld [vmem:[#allocation2 + $0x98] sm:$0xff]
        %v915 = vld [vmem:[#allocation2 + $0xa0] sm:$0xff]
        %v916 = vld [vmem:[#allocation2 + $0xa8] sm:$0xff]
        %v917 = vld [vmem:[#allocation2 + $0xb0] sm:$0xff]
        %v918 = vld [vmem:[#allocation2 + $0xb8] sm:$0xff]
        %v919 = vld [vmem:[#allocation2 + $0xc0] sm:$0xff]
        %v920 = vld [vmem:[#allocation2 + $0xc8] sm:$0xff]
        %v921 = vld [vmem:[#allocation2 + $0xd0] sm:$0xff]
        %v922 = vld [vmem:[#allocation2 + $0xd8] sm:$0xff]
        %v923 = vld [vmem:[#allocation2 + $0xe0] sm:$0xff]
        %v924 = vld [vmem:[#allocation2 + $0xe8] sm:$0xff]
        %v925 = vld [vmem:[#allocation2 + $0xf0] sm:$0xff]
        %v926 = vld [vmem:[#allocation2 + $0xf8] sm:$0xff]
        %v927 = vmax.f32 %v895, 0.0
        %v928 = vmax.f32 %v896, 0.0
        %v929 = vmax.f32 %v897, 0.0
        %v930 = vmax.f32 %v898, 0.0
        %v931 = vmax.f32 %v899, 0.0
        %v932 = vmax.f32 %v900, 0.0
        %v933 = vmax.f32 %v901, 0.0
        %v934 = vmax.f32 %v902, 0.0
        %v935 = vmax.f32 %v903, 0.0
        %v936 = vmax.f32 %v904, 0.0
        %v937 = vmax.f32 %v905, 0.0
        %v938 = vmax.f32 %v906, 0.0
        %v939 = vmax.f32 %v907, 0.0
        %v940 = vmax.f32 %v908, 0.0
        %v941 = vmax.f32 %v909, 0.0
        %v942 = vmax.f32 %v910, 0.0
        %v943 = vmax.f32 %v911, 0.0
        %v944 = vmax.f32 %v912, 0.0
        %v945 = vmax.f32 %v913, 0.0
        %v946 = vmax.f32 %v914, 0.0
        %v947 = vmax.f32 %v915, 0.0
        %v948 = vmax.f32 %v916, 0.0
        %v949 = vmax.f32 %v917, 0.0
        %v950 = vmax.f32 %v918, 0.0
        %v951 = vmax.f32 %v919, 0.0
        %v952 = vmax.f32 %v920, 0.0
        %v953 = vmax.f32 %v921, 0.0
        %v954 = vmax.f32 %v922, 0.0
        %v955 = vmax.f32 %v923, 0.0
        %v956 = vmax.f32 %v924, 0.0
        %v957 = vmax.f32 %v925, 0.0
        %v958 = vmax.f32 %v926, 0.0
        %v959 = vpack.c.bf16 %v927, %v927
        %v960 = vpack.c.bf16 %v928, %v928
        %v961 = vpack.c.bf16 %v929, %v929
        %v962 = vpack.c.bf16 %v930, %v930
        %v963 = vpack.c.bf16 %v931, %v931
        %v964 = vpack.c.bf16 %v932, %v932
        %v965 = vpack.c.bf16 %v933, %v933
        %v966 = vpack.c.bf16 %v934, %v934
        %v967 = vpack.c.bf16 %v935, %v935
        %v968 = vpack.c.bf16 %v936, %v936
        %v969 = vpack.c.bf16 %v937, %v937
        %v970 = vpack.c.bf16 %v938, %v938
        %v971 = vpack.c.bf16 %v939, %v939
        %v972 = vpack.c.bf16 %v940, %v940
        %v973 = vpack.c.bf16 %v941, %v941
        %v974 = vpack.c.bf16 %v942, %v942
        %v975 = vpack.c.bf16 %v943, %v943
        %v976 = vpack.c.bf16 %v944, %v944
        %v977 = vpack.c.bf16 %v945, %v945
        %v978 = vpack.c.bf16 %v946, %v946
        %v979 = vpack.c.bf16 %v947, %v947
        %v980 = vpack.c.bf16 %v948, %v948
        %v981 = vpack.c.bf16 %v949, %v949
        %v982 = vpack.c.bf16 %v950, %v950
        %v983 = vpack.c.bf16 %v951, %v951
        %v984 = vpack.c.bf16 %v952, %v952
        %v985 = vpack.c.bf16 %v953, %v953
        %v986 = vpack.c.bf16 %v954, %v954
        %v987 = vpack.c.bf16 %v955, %v955
        %v988 = vpack.c.bf16 %v956, %v956
        %v989 = vpack.c.bf16 %v957, %v957
        %v990 = vpack.c.bf16 %v958, %v958
        %vm991 = vcmask 519168
        %992 = vst.msk [vmem:[%s265] sm:$0xf] %vm991, %v959
        %993 = vst.msk [vmem:[%s265 + $0x4] sm:$0xf] %vm991, %v960
        %994 = vst.msk [vmem:[%s265 + $0x8] sm:$0xf] %vm991, %v961
        %995 = vst.msk [vmem:[%s265 + $0xc] sm:$0xf] %vm991, %v962
        %996 = vst.msk [vmem:[%s265 + $0x10] sm:$0xf] %vm991, %v963
        %997 = vst.msk [vmem:[%s265 + $0x14] sm:$0xf] %vm991, %v964
        %998 = vst.msk [vmem:[%s265 + $0x18] sm:$0xf] %vm991, %v965
        %999 = vst.msk [vmem:[%s265 + $0x1c] sm:$0xf] %vm991, %v966
        %1000 = vst.msk [vmem:[%s265 + $0x20] sm:$0xf] %vm991, %v967
        %1001 = vst.msk [vmem:[%s265 + $0x24] sm:$0xf] %vm991, %v968
        %1002 = vst.msk [vmem:[%s265 + $0x28] sm:$0xf] %vm991, %v969
        %1003 = vst.msk [vmem:[%s265 + $0x2c] sm:$0xf] %vm991, %v970
        %1004 = vst.msk [vmem:[%s265 + $0x30] sm:$0xf] %vm991, %v971
        %1005 = vst.msk [vmem:[%s265 + $0x34] sm:$0xf] %vm991, %v972
        %1006 = vst.msk [vmem:[%s265 + $0x38] sm:$0xf] %vm991, %v973
        %1007 = vst.msk [vmem:[%s265 + $0x3c] sm:$0xf] %vm991, %v974
        %1008 = vst.msk [vmem:[%s265 + $0x40] sm:$0xf] %vm991, %v975
        %1009 = vst.msk [vmem:[%s265 + $0x44] sm:$0xf] %vm991, %v976
        %1010 = vst.msk [vmem:[%s265 + $0x48] sm:$0xf] %vm991, %v977
        %1011 = vst.msk [vmem:[%s265 + $0x4c] sm:$0xf] %vm991, %v978
        %1012 = vst.msk [vmem:[%s265 + $0x50] sm:$0xf] %vm991, %v979
        %1013 = vst.msk [vmem:[%s265 + $0x54] sm:$0xf] %vm991, %v980
        %1014 = vst.msk [vmem:[%s265 + $0x58] sm:$0xf] %vm991, %v981
        %1015 = vst.msk [vmem:[%s265 + $0x5c] sm:$0xf] %vm991, %v982
        %1016 = vst.msk [vmem:[%s265 + $0x60] sm:$0xf] %vm991, %v983
        %1017 = vst.msk [vmem:[%s265 + $0x64] sm:$0xf] %vm991, %v984
        %1018 = vst.msk [vmem:[%s265 + $0x68] sm:$0xf] %vm991, %v985
        %1019 = vst.msk [vmem:[%s265 + $0x6c] sm:$0xf] %vm991, %v986
        %1020 = vst.msk [vmem:[%s265 + $0x70] sm:$0xf] %vm991, %v987
        %1021 = vst.msk [vmem:[%s265 + $0x74] sm:$0xf] %vm991, %v988
        %1022 = vst.msk [vmem:[%s265 + $0x78] sm:$0xf] %vm991, %v989
        %1023 = vst.msk [vmem:[%s265 + $0x7c] sm:$0xf] %vm991, %v990
      $region40: #{tpu_custom_call.1} parent=31 // pred_fallthru
        _
      %s1024 = smul.u32 32, %s19
      %p1025 = scmp.lt.s32.totalorder %s1024, 63
      %s1026 = scalar_select %p1025, %s1024, 63
      %p1027 = scmp.lt.s32.totalorder %s20, 0
      %s1028 = scalar_select %p1027, %s20, 0
      %s1029 = sadd.s32 %s1028, %s1026
      %s1030 = smul.addr %s1029, 4
      %s1031 = scalar_lea.vmem %s3, %s1030
      // Predicated region
      $region41: #{tpu_custom_call.1} parent=31 // pred_check
        %p1032 = pneg %p135
      $region42: #{tpu_custom_call.1} parent=31 // pred_check_branch
        %1034 = sbr.rel (%p1032) target = $region44
      $region43: #{tpu_custom_call.1} parent=31 // pred_region
        %s1035 = smul.u32 32, %s19
      $region44: #{tpu_custom_call.1} parent=31 // pred_fallthru
        _
    $region32: #{tpu_custom_call.1} parent=5 // pred_fallthru
      _
    %p1036 = scmp.le.s32.totalorder 2, %s9
    // Predicated region
    $region45: #{tpu_custom_call.1} parent=5 // pred_check
      %p1037 = pneg %p1036
    $region46: #{tpu_custom_call.1} parent=5 // pred_check_branch
      %1039 = sbr.rel (%p1037) target = $region48
    $region47: #{tpu_custom_call.1} parent=5 // pred_region
      %s1040 = ssub.s32 %s9, 2
      // Predicated region
      $region49: #{tpu_custom_call.1} parent=47 // pred_check
        %p1041 = pneg %p141
      $region50: #{tpu_custom_call.1} parent=47 // pred_check_branch
        %1043 = sbr.rel (%p1041) target = $region52
      $region51: #{tpu_custom_call.1} parent=47 // pred_region
        %s1044 = smul.u32 32, %s22
        %p1045 = scmp.lt.s32.totalorder %s1044, 63
        %s1046 = scalar_select %p1045, %s1044, 63
        %p1047 = scmp.lt.s32.totalorder %s23, 0
        %s1048 = scalar_select %p1047, %s23, 0
        %s1049 = sadd.s32 %s1048, %s1046
        %s1050 = smul.addr %s1049, 4
        %s1051 = scalar_lea.vmem %s3, %s1050
      $region52: #{tpu_custom_call.1} parent=47 // pred_fallthru
        _
    $region48: #{tpu_custom_call.1} parent=5 // pred_fallthru
      _
  $region6: #{tpu_custom_call.1} parent=0 // loop_footer
    %s13 = sadd.s32 1, %s9
  $region7: #{tpu_custom_call.1} parent=0 // loop_footer_branch
    %8 = sbr.rel target = $region3
  $region8: #{tpu_custom_call.1} parent=0 // loop_exit
    _

</llo_original>
